<compile_context>
chip_gen: v6e
topology: v6e:2x2x1
jax: 0.10.0
libtpu: 0.0.40
codegen_flags: <defaults>
</compile_context>

<pallas_src>
import jax
import jax.numpy as jnp
from jax.experimental import pallas as pl
from jax.experimental.pallas import tpu as pltpu


def _round_up(n, m):
    return ((n + m - 1) // m) * m


def _cdiv(a, b):
    return -(-a // b)


def critic_kernel(x_ref, u_ref, w1x_ref, w1u_ref, b1_ref,
                  w2_ref, b2_ref, w3t_ref, b3_ref, o_ref):
    """Fused 3-layer MLP on one (tb, .) batch tile:
       relu(x@W1x + u@W1u + b1) -> relu(.@W2 + b2) -> sum(.*w3^T, -1) + b3
    f32 accumulation throughout; MXU inputs in the weights' storage dtype."""
    w_dtype = w1x_ref.dtype  # f32 or bf16

    x = x_ref[...].astype(w_dtype)
    u = u_ref[...].astype(w_dtype)
    h1 = (jnp.dot(x, w1x_ref[...], preferred_element_type=jnp.float32)
          + jnp.dot(u, w1u_ref[...], preferred_element_type=jnp.float32)
          + b1_ref[...])
    h1 = jnp.maximum(h1, 0.0)

    h2 = jnp.dot(h1.astype(w_dtype), w2_ref[...],
                 preferred_element_type=jnp.float32) + b2_ref[...]
    h2 = jnp.maximum(h2, 0.0)

    # Layer 3: only one real output column -> VPU multiply + XLU lane reduction
    # instead of a 128-column padded MXU matmul.  f32 epilogue (v5e-safe).
    q = jnp.sum(h2 * w3t_ref[...].astype(jnp.float32), axis=-1, keepdims=True)
    o_ref[...] = (q + b3_ref[...]).astype(o_ref.dtype)


def init_critic_params(key, state_dim, action_dim):
    """PyTorch nn.Linear default init: U(-1/sqrt(fan_in), 1/sqrt(fan_in)).
    Weights stored transposed vs. torch, i.e. (in_features, out_features); biases (1, out)."""
    def linear(k, fan_in, fan_out):
        kw, kb = jax.random.split(k)
        bound = 1.0 / jnp.sqrt(jnp.float32(fan_in))
        w = jax.random.uniform(kw, (fan_in, fan_out), jnp.float32, -bound, bound)
        b = jax.random.uniform(kb, (1, fan_out), jnp.float32, -bound, bound)
        return w, b

    k1, k2, k3 = jax.random.split(key, 3)
    w1, b1 = linear(k1, state_dim + action_dim, 400)
    w2, b2 = linear(k2, 400, 300)
    w3, b3 = linear(k3, 300, 1)
    return (w1, b1, w2, b2, w3, b3)


def pad_critic_params(params, state_dim, weights_dtype=jnp.bfloat16,
                      hidden_align=128, k_align=8):
    """Split W1 into state/action parts and zero-pad to TPU-friendly shapes
    (done ONCE, outside the hot path).  Zero padding keeps the math exact:
    zero input cols / zero weight rows contribute 0 and ReLU(0)=0.
    Biases stay f32 for the epilogue adds; weights optionally bf16."""
    w1, b1, w2, b2, w3, b3 = params
    action_dim = w1.shape[0] - state_dim

    h1p = _round_up(w1.shape[1], hidden_align)   # 400 -> 512
    h2p = _round_up(w2.shape[1], hidden_align)   # 300 -> 384

    def padcast(a, rows, cols, dtype):
        a = jnp.pad(a, ((0, rows - a.shape[0]), (0, cols - a.shape[1])))
        return a.astype(dtype)

    sdp = _round_up(state_dim, k_align)          # 8  -> 8
    adp = _round_up(action_dim, k_align)         # 2  -> 8

    w1x = padcast(w1[:state_dim], sdp, h1p, weights_dtype)
    w1u = padcast(w1[state_dim:], adp, h1p, weights_dtype)
    b1p = padcast(b1, 1, h1p, jnp.float32)
    w2p = padcast(w2, h1p, h2p, weights_dtype)
    b2p = padcast(b2, 1, h2p, jnp.float32)
    w3t = padcast(w3.T, 1, h2p, weights_dtype)   # (1, h2p) row -> lane-reduced in kernel
    b3p = b3.astype(jnp.float32)                 # (1, 1)
    return (w1x, w1u, b1p, w2p, b2p, w3t, b3p)


def critic_forward(x, u, padded_params, *, block_b=1024, min_steps=2):
    """x: (B, state_dim), u: (B, action_dim).  Returns (B, 1) f32 Q-values."""
    w1x, w1u, b1, w2, b2, w3t, b3 = padded_params
    B, state_dim = x.shape
    action_dim = u.shape[1]
    sdp, adp = w1x.shape[0], w1u.shape[0]
    assert state_dim <= sdp and action_dim <= adp

    # Adaptive batch tile: >= min_steps grid steps when B is large enough (lets the
    # "parallel" grid axis split across v7x's two TensorCores), capped at block_b
    # rows/step to amortize the ~0.35us/step overhead, multiple of 8 sublanes.
    if B > 8 * min_steps:
        n_steps = max(min_steps, _cdiv(B, block_b))
        tb = _round_up(_cdiv(B, n_steps), 8)
    else:
        tb = _round_up(max(B, 8), 8)
    b_pad = _round_up(B, tb)
    grid = (b_pad // tb,)

    # Only row-padding (and tiny col-padding of u, 2->8); no 128-wide HBM slab.
    xp = jnp.pad(x.astype(jnp.float32), ((0, b_pad - B), (0, sdp - state_dim)))
    up = jnp.pad(u.astype(jnp.float32), ((0, b_pad - B), (0, adp - action_dim)))

    def resident(a):  # full-array block, constant index_map -> VMEM-resident across steps
        return pl.BlockSpec(a.shape, lambda i: (0, 0))

    q = pl.pallas_call(
        critic_kernel,
        out_shape=jax.ShapeDtypeStruct((b_pad, 1), jnp.float32),
        grid=grid,
        in_specs=[pl.BlockSpec((tb, sdp), lambda i: (i, 0)),
                  pl.BlockSpec((tb, adp), lambda i: (i, 0)),
                  resident(w1x), resident(w1u), resident(b1),
                  resident(w2), resident(b2),
                  resident(w3t), resident(b3)],
        out_specs=pl.BlockSpec((tb, 1), lambda i: (i, 0)),
        compiler_params=pltpu.CompilerParams(
            dimension_semantics=("parallel",)),
    )(xp, up, w1x, w1u, b1, w2, b2, w3t, b3)

    return q[:B]


def critic_reference(x, u, params):
    """Pure-JAX reference (unpadded f32 params) matching the PyTorch forward."""
    w1, b1, w2, b2, w3, b3 = params
    xu = jnp.concatenate([x, u], axis=1)
    h1 = jnp.maximum(xu @ w1 + b1, 0.0)
    h2 = jnp.maximum(h1 @ w2 + b2, 0.0)
    return h2 @ w3 + b3


if __name__ == "__main__":
    # LunarLanderContinuous-v2: state_dim=8, action_dim=2
    state_dim, action_dim = 8, 2
    batch = 8

    key = jax.random.PRNGKey(0)
    kx, ku, kp = jax.random.split(key, 3)
    x = jax.random.normal(kx, (batch, state_dim), dtype=jnp.float32)
    u = jax.random.normal(ku, (batch, action_dim), dtype=jnp.float32)
    params = init_critic_params(kp, state_dim, action_dim)
    ref = critic_reference(x, u, params)

    # f32 path: zero padding is exact, so this must match the reference.
    p_f32 = pad_critic_params(params, state_dim, weights_dtype=jnp.float32)
    q_f32 = jax.block_until_ready(critic_forward(x, u, p_f32))
    assert q_f32.shape == (batch, 1)
    assert jnp.allclose(q_f32, ref, atol=1e-5, rtol=1e-5), "f32 path mismatch vs reference"

    # Default bf16 weights/activations (v6e/v7x MXU rate + half the weight DMA);
    # f32 accumulation keeps it close.
    p_bf16 = pad_critic_params(params, state_dim)  # default weights_dtype=bf16
    q_bf16 = jax.block_until_ready(critic_forward(x, u, p_bf16))
    assert q_bf16.shape == (batch, 1)
    assert jnp.allclose(q_bf16, ref, atol=5e-2, rtol=5e-2), "bf16 path mismatch vs reference"

    # Larger, non-multiple batch exercises the adaptive multi-step (parallel) grid
    # and the padded-row tail (B=300 -> tb=152, 2 grid steps).
    big_b = 300
    kxb, kub = jax.random.split(jax.random.PRNGKey(1))
    xb = jax.random.normal(kxb, (big_b, state_dim), dtype=jnp.float32)
    ub = jax.random.normal(kub, (big_b, action_dim), dtype=jnp.float32)
    q_big = jax.block_until_ready(critic_forward(xb, ub, p_f32))
    assert q_big.shape == (big_b, 1)
    assert jnp.allclose(q_big, critic_reference(xb, ub, params), atol=1e-4, rtol=1e-4), \
        "batched-grid path mismatch vs reference"

    print("KERNEL_OK")
</pallas_src>

<mosaic_0001>
module attributes {stable_mosaic.version = 11 : i64} {
  func.func @critic_kernel(%arg0: i32, %arg1: memref<8x8xf32, #tpu.memory_space<vmem>>, %arg2: memref<8x8xf32, #tpu.memory_space<vmem>>, %arg3: memref<8x512xf32, #tpu.memory_space<vmem>>, %arg4: memref<8x512xf32, #tpu.memory_space<vmem>>, %arg5: memref<1x512xf32, #tpu.memory_space<vmem>>, %arg6: memref<512x384xf32, #tpu.memory_space<vmem>>, %arg7: memref<1x384xf32, #tpu.memory_space<vmem>>, %arg8: memref<1x384xf32, #tpu.memory_space<vmem>>, %arg9: memref<1x1xf32, #tpu.memory_space<vmem>>, %arg10: memref<8x1xf32, #tpu.memory_space<vmem>>) attributes {dimension_semantics = [#tpu.dimension_semantics<parallel>], iteration_bounds = array<i64: 1>, scalar_prefetch = 0 : i64, scratch_operands = 0 : i64, tpu.core_type = #tpu.core_type<tc>, window_params = [{transform_indices = @transform_0, window_bounds = array<i64: 8, 8>}, {transform_indices = @transform_1, window_bounds = array<i64: 8, 8>}, {pipeline_mode = #tpu.pipeline_mode<synchronous>, transform_indices = @transform_2, window_bounds = array<i64: 8, 512>}, {pipeline_mode = #tpu.pipeline_mode<synchronous>, transform_indices = @transform_3, window_bounds = array<i64: 8, 512>}, {pipeline_mode = #tpu.pipeline_mode<synchronous>, transform_indices = @transform_4, window_bounds = array<i64: 1, 512>}, {pipeline_mode = #tpu.pipeline_mode<synchronous>, transform_indices = @transform_5, window_bounds = array<i64: 512, 384>}, {pipeline_mode = #tpu.pipeline_mode<synchronous>, transform_indices = @transform_6, window_bounds = array<i64: 1, 384>}, {pipeline_mode = #tpu.pipeline_mode<synchronous>, transform_indices = @transform_7, window_bounds = array<i64: 1, 384>}, {pipeline_mode = #tpu.pipeline_mode<synchronous>, transform_indices = @transform_8, window_bounds = array<i64: 1, 1>}, {transform_indices = @transform_9, window_bounds = array<i64: 8, 1>}]} {
    %c0 = arith.constant 0 : index
    %c0_0 = arith.constant 0 : index
    %0 = vector.load %arg1[%c0, %c0_0] : memref<8x8xf32, #tpu.memory_space<vmem>>, vector<8x8xf32>
    %c0_1 = arith.constant 0 : index
    %c0_2 = arith.constant 0 : index
    %1 = vector.load %arg2[%c0_1, %c0_2] : memref<8x8xf32, #tpu.memory_space<vmem>>, vector<8x8xf32>
    %c0_3 = arith.constant 0 : index
    %c0_4 = arith.constant 0 : index
    %2 = vector.load %arg3[%c0_3, %c0_4] : memref<8x512xf32, #tpu.memory_space<vmem>>, vector<8x512xf32>
    %cst = arith.constant dense<0.000000e+00> : vector<8x512xf32>
    %3 = tpu.matmul %0, %2, %cst {dimension_numbers = #tpu.dot_dimension_numbers<[1], [0], [0], [1], [0, 0, 1, 1], [], []>} : vector<8x8xf32>, vector<8x512xf32>, vector<8x512xf32> -> vector<8x512xf32>
    %c0_5 = arith.constant 0 : index
    %c0_6 = arith.constant 0 : index
    %4 = vector.load %arg4[%c0_5, %c0_6] : memref<8x512xf32, #tpu.memory_space<vmem>>, vector<8x512xf32>
    %cst_7 = arith.constant dense<0.000000e+00> : vector<8x512xf32>
    %5 = tpu.matmul %1, %4, %cst_7 {dimension_numbers = #tpu.dot_dimension_numbers<[1], [0], [0], [1], [0, 0, 1, 1], [], []>} : vector<8x8xf32>, vector<8x512xf32>, vector<8x512xf32> -> vector<8x512xf32>
    %6 = arith.addf %3, %5 : vector<8x512xf32>
    %c0_8 = arith.constant 0 : index
    %c0_9 = arith.constant 0 : index
    %7 = vector.load %arg5[%c0_8, %c0_9] : memref<1x512xf32, #tpu.memory_space<vmem>>, vector<1x512xf32>
    %8 = vector.broadcast %7 : vector<1x512xf32> to vector<8x512xf32>
    %9 = arith.addf %6, %8 : vector<8x512xf32>
    %cst_10 = arith.constant 0.000000e+00 : f32
    %10 = vector.broadcast %cst_10 : f32 to vector<8x512xf32>
    %11 = arith.maximumf %9, %10 : vector<8x512xf32>
    %c0_11 = arith.constant 0 : index
    %c0_12 = arith.constant 0 : index
    %12 = vector.load %arg6[%c0_11, %c0_12] : memref<512x384xf32, #tpu.memory_space<vmem>>, vector<512x384xf32>
    %cst_13 = arith.constant dense<0.000000e+00> : vector<8x384xf32>
    %13 = tpu.matmul %11, %12, %cst_13 {dimension_numbers = #tpu.dot_dimension_numbers<[1], [0], [0], [1], [0, 0, 1, 1], [], []>} : vector<8x512xf32>, vector<512x384xf32>, vector<8x384xf32> -> vector<8x384xf32>
    %c0_14 = arith.constant 0 : index
    %c0_15 = arith.constant 0 : index
    %14 = vector.load %arg7[%c0_14, %c0_15] : memref<1x384xf32, #tpu.memory_space<vmem>>, vector<1x384xf32>
    %15 = vector.broadcast %14 : vector<1x384xf32> to vector<8x384xf32>
    %16 = arith.addf %13, %15 : vector<8x384xf32>
    %cst_16 = arith.constant 0.000000e+00 : f32
    %17 = vector.broadcast %cst_16 : f32 to vector<8x384xf32>
    %18 = arith.maximumf %16, %17 : vector<8x384xf32>
    %c0_17 = arith.constant 0 : index
    %c0_18 = arith.constant 0 : index
    %19 = vector.load %arg8[%c0_17, %c0_18] : memref<1x384xf32, #tpu.memory_space<vmem>>, vector<1x384xf32>
    %20 = vector.broadcast %19 : vector<1x384xf32> to vector<8x384xf32>
    %21 = arith.mulf %18, %20 : vector<8x384xf32>
    %cst_19 = arith.constant dense<0.000000e+00> : vector<8xf32>
    %22 = vector.multi_reduction <add>, %21, %cst_19 [1] : vector<8x384xf32> to vector<8xf32>
    %23 = vector.shape_cast %22 : vector<8xf32> to vector<8x1xf32>
    %c0_20 = arith.constant 0 : index
    %c0_21 = arith.constant 0 : index
    %24 = vector.load %arg9[%c0_20, %c0_21] : memref<1x1xf32, #tpu.memory_space<vmem>>, vector<1x1xf32>
    %25 = vector.broadcast %24 : vector<1x1xf32> to vector<8x1xf32>
    %26 = arith.addf %23, %25 : vector<8x1xf32>
    %c0_22 = arith.constant 0 : index
    %c0_23 = arith.constant 0 : index
    %27 = vector.load %arg10[%c0_22, %c0_23] : memref<8x1xf32, #tpu.memory_space<vmem>>, vector<8x1xf32>
    tpu.vector_store %arg10[%c0_22, %c0_23], %26 {strides = array<i32>} : memref<8x1xf32, #tpu.memory_space<vmem>>, vector<8x1xf32>,
    return
  }
  func.func @transform_0(%arg0: i32) -> (i32, i32) {
    %c0_i32 = arith.constant 0 : i32
    %c0_i32_0 = arith.constant 0 : i32
    return %arg0, %c0_i32 : i32, i32
  }
  func.func @transform_1(%arg0: i32) -> (i32, i32) {
    %c0_i32 = arith.constant 0 : i32
    %c0_i32_0 = arith.constant 0 : i32
    return %arg0, %c0_i32 : i32, i32
  }
  func.func @transform_2(%arg0: i32) -> (i32, i32) {
    %c0_i32 = arith.constant 0 : i32
    %c0_i32_0 = arith.constant 0 : i32
    %c0_i32_1 = arith.constant 0 : i32
    return %c0_i32, %c0_i32_0 : i32, i32
  }
  func.func @transform_3(%arg0: i32) -> (i32, i32) {
    %c0_i32 = arith.constant 0 : i32
    %c0_i32_0 = arith.constant 0 : i32
    %c0_i32_1 = arith.constant 0 : i32
    return %c0_i32, %c0_i32_0 : i32, i32
  }
  func.func @transform_4(%arg0: i32) -> (i32, i32) {
    %c0_i32 = arith.constant 0 : i32
    %c0_i32_0 = arith.constant 0 : i32
    %c0_i32_1 = arith.constant 0 : i32
    return %c0_i32, %c0_i32_0 : i32, i32
  }
  func.func @transform_5(%arg0: i32) -> (i32, i32) {
    %c0_i32 = arith.constant 0 : i32
    %c0_i32_0 = arith.constant 0 : i32
    %c0_i32_1 = arith.constant 0 : i32
    return %c0_i32, %c0_i32_0 : i32, i32
  }
  func.func @transform_6(%arg0: i32) -> (i32, i32) {
    %c0_i32 = arith.constant 0 : i32
    %c0_i32_0 = arith.constant 0 : i32
    %c0_i32_1 = arith.constant 0 : i32
    return %c0_i32, %c0_i32_0 : i32, i32
  }
  func.func @transform_7(%arg0: i32) -> (i32, i32) {
    %c0_i32 = arith.constant 0 : i32
    %c0_i32_0 = arith.constant 0 : i32
    %c0_i32_1 = arith.constant 0 : i32
    return %c0_i32, %c0_i32_0 : i32, i32
  }
  func.func @transform_8(%arg0: i32) -> (i32, i32) {
    %c0_i32 = arith.constant 0 : i32
    %c0_i32_0 = arith.constant 0 : i32
    %c0_i32_1 = arith.constant 0 : i32
    return %c0_i32, %c0_i32_0 : i32, i32
  }
  func.func @transform_9(%arg0: i32) -> (i32, i32) {
    %c0_i32 = arith.constant 0 : i32
    %c0_i32_0 = arith.constant 0 : i32
    return %arg0, %c0_i32 : i32, i32
  }
}

</mosaic_0001>

<llo_original>
// kernel: tpu_custom_call.1
$region0: #{tpu_custom_call.1}
  #allocation0 [shape = 'u32[]', space=smem, size = 0x4, offset = 0x4, fixed_abs, tag = 'smem constant byte address 0x4 - core index']
  #allocation1 [shape = 'u32[144,128]{1,0:T(1,128)}', space=vmem, size = 0x12000, scoped, tag = 'internal scratch']
  #allocation2 [shape = 'f32[1,1]{1,0:T(1,128)S(1)}', space=vmem, size = 0x200, scoped, tag = 'scoped memory for tpu_custom_call.1']
  %s0 = inlined_call_operand.hbm [shape: f32[8,8], index: 0, kind: input, shape index: {}]
  %s1 = inlined_call_operand.hbm [shape: f32[8,8], index: 1, kind: input, shape index: {}]
  %s2 = inlined_call_operand.hbm [shape: f32[8,512], index: 2, kind: input, shape index: {}]
  %s3 = inlined_call_operand.hbm [shape: f32[8,512], index: 3, kind: input, shape index: {}]
  %s4 = inlined_call_operand.vmem [shape: f32[1,512], index: 4, kind: input, shape index: {}]
  %s5 = inlined_call_operand.hbm [shape: f32[512,384], index: 5, kind: input, shape index: {}]
  %s6 = inlined_call_operand.vmem [shape: f32[1,384], index: 6, kind: input, shape index: {}]
  %s7 = inlined_call_operand.vmem [shape: f32[1,384], index: 7, kind: input, shape index: {}]
  %s8 = inlined_call_operand.<no memory space> [shape: f32[1,1], index: 8, kind: input, shape index: {}]
  %s9 = inlined_call_operand.vmem [shape: f32[8,1], index: 9, kind: output, shape index: {}]
  %s10 = sld [smem:[#allocation0]]
  $region66: #{tpu_custom_call.1} parent=0
    _
  %s12 = ssub.s32 1, %s10
  %s13 = scalar_select 0, %s12, %s10
  %v14 = vstv %s8
  %15 = vst [vmem:[#allocation2] sm:$0x1] %v14
  $region1: #{tpu_custom_call.1} parent=0
    #allocation3 [shape = 'u8[4096]{0}', space=vmem, size = 0x1000, scoped, tag = 'input window, operand 0, single buffered']
    #allocation4 [shape = 's32[1]{0}', space=sflag, size = 0x4, scoped, tag = 'scoped memory for tpu_custom_call.1']
    #allocation5 [shape = 'u8[4096]{0}', space=vmem, size = 0x1000, scoped, tag = 'input window, operand 1, single buffered']
    #allocation6 [shape = 's32[1]{0}', space=sflag, size = 0x4, scoped, tag = 'scoped memory for tpu_custom_call.1']
    #allocation7 [shape = 'u8[16384]{0}', space=vmem, size = 0x4000, scoped, tag = 'input window, operand 2, single buffered']
    #allocation8 [shape = 'u8[16384]{0}', space=vmem, size = 0x4000, scoped, tag = 'input window, operand 3, single buffered']
    #allocation9 [shape = 's32[1]{0}', space=sflag, size = 0x4, scoped, tag = 'scoped memory for tpu_custom_call.1']
    #allocation10 [shape = 'u8[786432]{0}', space=vmem, size = 0xc0000, scoped, tag = 'input window, operand 5, single buffered']
    %16 = vsyncpa [#allocation4], 0
    %17 = vsyncpa [#allocation6], 0
    %18 = vsyncpa [#allocation9], 0
    // Predicated region
    $region2: #{tpu_custom_call.1} parent=1 // pred_check
      _
    $region3: #{tpu_custom_call.1} parent=1 // pred_check_branch
      %20 = sbr.rel (0) target = $region5
    $region4: #{tpu_custom_call.1} parent=1 // pred_region
      %s22 = ssub.s32 128, 128
      %23 = vsyncadd [#allocation4], %s22
      %s25 = sshll.u32 [#allocation3], 4
      %s26 = int_to_ptr.vmem [resolvable:$true] %s25
      %28 = dma.hbm_to_vmem [thread:$0]  %s0, 128, %s26, [#allocation4]
    $region5: #{tpu_custom_call.1} parent=1 // pred_fallthru
      _
    // Predicated region
    $region6: #{tpu_custom_call.1} parent=1 // pred_check
      _
    $region7: #{tpu_custom_call.1} parent=1 // pred_check_branch
      %30 = sbr.rel (0) target = $region9
    $region8: #{tpu_custom_call.1} parent=1 // pred_region
      %s32 = ssub.s32 128, 128
      %33 = vsyncadd [#allocation6], %s32
      %s35 = sshll.u32 [#allocation5], 4
      %s36 = int_to_ptr.vmem [resolvable:$true] %s35
      %38 = dma.hbm_to_vmem [thread:$0]  %s1, 128, %s36, [#allocation6]
    $region9: #{tpu_custom_call.1} parent=1 // pred_fallthru
      _
    // Predicated region
    $region10: #{tpu_custom_call.1} parent=1 // pred_check
      _
    $region11: #{tpu_custom_call.1} parent=1 // pred_check_branch
      %40 = sbr.rel (0) target = $region13
    $region12: #{tpu_custom_call.1} parent=1 // pred_region
      %s42 = ssub.s32 512, 512
      %43 = vsyncadd [#allocation6], %s42
      %s45 = sshll.u32 [#allocation7], 4
      %s46 = int_to_ptr.vmem [resolvable:$true] %s45
      %48 = dma.hbm_to_vmem [thread:$0]  %s2, 512, %s46, [#allocation6]
    $region13: #{tpu_custom_call.1} parent=1 // pred_fallthru
      _
    // Predicated region
    $region14: #{tpu_custom_call.1} parent=1 // pred_check
      _
    $region15: #{tpu_custom_call.1} parent=1 // pred_check_branch
      %50 = sbr.rel (0) target = $region17
    $region16: #{tpu_custom_call.1} parent=1 // pred_region
      %s52 = ssub.s32 512, 512
      %53 = vsyncadd [#allocation9], %s52
      %s55 = sshll.u32 [#allocation8], 4
      %s56 = int_to_ptr.vmem [resolvable:$true] %s55
      %58 = dma.hbm_to_vmem [thread:$0]  %s3, 512, %s56, [#allocation9]
    $region17: #{tpu_custom_call.1} parent=1 // pred_fallthru
      _
    // Predicated region
    $region18: #{tpu_custom_call.1} parent=1 // pred_check
      _
    $region19: #{tpu_custom_call.1} parent=1 // pred_check_branch
      %60 = sbr.rel (0) target = $region21
    $region20: #{tpu_custom_call.1} parent=1 // pred_region
      _
    $region21: #{tpu_custom_call.1} parent=1 // pred_fallthru
      _
    // Predicated region
    $region22: #{tpu_custom_call.1} parent=1 // pred_check
      _
    $region23: #{tpu_custom_call.1} parent=1 // pred_check_branch
      %62 = sbr.rel (0) target = $region25
    $region24: #{tpu_custom_call.1} parent=1 // pred_region
      %s64 = ssub.s32 24576, 24576
      %65 = vsyncadd [#allocation9], %s64
      %s66 = sshll.u32 [#allocation10], 4
      %s67 = int_to_ptr.vmem [resolvable:$true] %s66
      %72 = dma.hbm_to_vmem [thread:$0]  %s5, 24576, %s67, [#allocation9], 384, 384, 24
    $region25: #{tpu_custom_call.1} parent=1 // pred_fallthru
      _
    // Predicated region
    $region26: #{tpu_custom_call.1} parent=1 // pred_check
      _
    $region27: #{tpu_custom_call.1} parent=1 // pred_check_branch
      %74 = sbr.rel (0) target = $region29
    $region28: #{tpu_custom_call.1} parent=1 // pred_region
      _
    $region29: #{tpu_custom_call.1} parent=1 // pred_fallthru
      _
    // Predicated region
    $region30: #{tpu_custom_call.1} parent=1 // pred_check
      _
    $region31: #{tpu_custom_call.1} parent=1 // pred_check_branch
      %76 = sbr.rel (0) target = $region33
    $region32: #{tpu_custom_call.1} parent=1 // pred_region
      _
    $region33: #{tpu_custom_call.1} parent=1 // pred_fallthru
      _
    // Predicated region
    $region34: #{tpu_custom_call.1} parent=1 // pred_check
      _
    $region35: #{tpu_custom_call.1} parent=1 // pred_check_branch
      %78 = sbr.rel (0) target = $region37
    $region36: #{tpu_custom_call.1} parent=1 // pred_region
      _
    $region37: #{tpu_custom_call.1} parent=1 // pred_fallthru
      _
    // Predicated region
    $region38: #{tpu_custom_call.1} parent=1 // pred_check
      _
    $region39: #{tpu_custom_call.1} parent=1 // pred_check_branch
      %80 = sbr.rel (0) target = $region41
    $region40: #{tpu_custom_call.1} parent=1 // pred_region
      %81 = dma.done [#allocation4], 128
    $region41: #{tpu_custom_call.1} parent=1 // pred_fallthru
      _
    // Predicated region
    $region42: #{tpu_custom_call.1} parent=1 // pred_check
      _
    $region43: #{tpu_custom_call.1} parent=1 // pred_check_branch
      %83 = sbr.rel (0) target = $region45
    $region44: #{tpu_custom_call.1} parent=1 // pred_region
      %84 = dma.done [#allocation6], 128
    $region45: #{tpu_custom_call.1} parent=1 // pred_fallthru
      _
    // Predicated region
    $region46: #{tpu_custom_call.1} parent=1 // pred_check
      _
    $region47: #{tpu_custom_call.1} parent=1 // pred_check_branch
      %86 = sbr.rel (0) target = $region49
    $region48: #{tpu_custom_call.1} parent=1 // pred_region
      %87 = dma.done [#allocation6], 512
    $region49: #{tpu_custom_call.1} parent=1 // pred_fallthru
      _
    // Predicated region
    $region50: #{tpu_custom_call.1} parent=1 // pred_check
      _
    $region51: #{tpu_custom_call.1} parent=1 // pred_check_branch
      %89 = sbr.rel (0) target = $region53
    $region52: #{tpu_custom_call.1} parent=1 // pred_region
      %90 = dma.done [#allocation9], 512
    $region53: #{tpu_custom_call.1} parent=1 // pred_fallthru
      _
    // Predicated region
    $region54: #{tpu_custom_call.1} parent=1 // pred_check
      _
    $region55: #{tpu_custom_call.1} parent=1 // pred_check_branch
      %92 = sbr.rel (0) target = $region57
    $region56: #{tpu_custom_call.1} parent=1 // pred_region
      %93 = dma.done [#allocation9], 24576
    $region57: #{tpu_custom_call.1} parent=1 // pred_fallthru
      _
    %v94 = vld [vmem:[#allocation3] sm:$0xff]
    %v95 = vld [vmem:[#allocation5] sm:$0xff]
    %v96 = vld [vmem:[#allocation7] sm:$0xff]
    %v97 = vld [vmem:[#allocation7 + $0x8] sm:$0xff]
    %v98 = vld [vmem:[#allocation7 + $0x10] sm:$0xff]
    %v99 = vld [vmem:[#allocation7 + $0x18] sm:$0xff]
    %v100 = vld [vmem:[#allocation8] sm:$0xff]
    %v101 = vld [vmem:[#allocation8 + $0x8] sm:$0xff]
    %v102 = vld [vmem:[#allocation8 + $0x10] sm:$0xff]
    %v103 = vld [vmem:[#allocation8 + $0x18] sm:$0xff]
    %vm104 = vcmask 64512
    %v106 = vsel %vm104, %v95, 0
    %108 = vmatprep.subr.mxu0 0.0
    %109 = vmatpush1.msra.mxu0 0.0
    %110 = vmatprep.subr.mxu0 0.0
    %111 = vmatpush1.msra.mxu0 0.0
    %112 = vmatprep.subr.mxu0 0.0
    %113 = vmatpush1.msra.mxu0 0.0
    %114 = vmatprep.subr.mxu0 0.0
    %115 = vmatpush1.msra.mxu0 0.0
    %116 = vmatprep.subr.mxu0 0.0
    %117 = vmatpush1.msra.mxu0 0.0
    %118 = vmatprep.subr.mxu0 0.0
    %119 = vmatpush1.msra.mxu0 0.0
    %120 = vmatprep.subr.mxu0 0.0
    %121 = vmatpush1.msra.mxu0 0.0
    %122 = vmatprep.subr.mxu0 0.0
    %123 = vmatpush1.msra.mxu0 0.0
    %124 = vmatprep.subr.mxu0 0.0
    %125 = vmatpush1.msra.mxu0 0.0
    %126 = vmatprep.subr.mxu0 0.0
    %127 = vmatpush1.msra.mxu0 0.0
    %128 = vmatprep.subr.mxu0 0.0
    %129 = vmatpush1.msra.mxu0 0.0
    %130 = vmatprep.subr.mxu0 0.0
    %131 = vmatpush1.msra.mxu0 0.0
    %132 = vmatprep.subr.mxu0 0.0
    %133 = vmatpush1.msra.mxu0 0.0
    %134 = vmatprep.subr.mxu0 0.0
    %135 = vmatpush1.msra.mxu0 0.0
    %136 = vmatprep.subr.mxu0 0.0
    %137 = vmatpush1.msra.mxu0 0.0
    %138 = vmatprep.subr.mxu0 %v101
    %139 = vmatpush1.msra.mxu0 %v100
    %140 = vmatprep.subr.mxu0 0.0
    %141 = vmatpush2.msra.mxu0 0.0
    %142 = vmatprep.subr.mxu0 0.0
    %143 = vmatpush2.msra.mxu0 0.0
    %144 = vmatprep.subr.mxu0 0.0
    %145 = vmatpush2.msra.mxu0 0.0
    %146 = vmatprep.subr.mxu0 0.0
    %147 = vmatpush2.msra.mxu0 0.0
    %148 = vmatprep.subr.mxu0 0.0
    %149 = vmatpush2.msra.mxu0 0.0
    %150 = vmatprep.subr.mxu0 0.0
    %151 = vmatpush2.msra.mxu0 0.0
    %152 = vmatprep.subr.mxu0 0.0
    %153 = vmatpush2.msra.mxu0 0.0
    %154 = vmatprep.subr.mxu0 0.0
    %155 = vmatpush2.msra.mxu0 0.0
    %156 = vmatprep.subr.mxu0 0.0
    %157 = vmatpush2.msra.mxu0 0.0
    %158 = vmatprep.subr.mxu0 0.0
    %159 = vmatpush2.msra.mxu0 0.0
    %160 = vmatprep.subr.mxu0 0.0
    %161 = vmatpush2.msra.mxu0 0.0
    %162 = vmatprep.subr.mxu0 0.0
    %163 = vmatpush2.msra.mxu0 0.0
    %164 = vmatprep.subr.mxu0 0.0
    %165 = vmatpush2.msra.mxu0 0.0
    %166 = vmatprep.subr.mxu0 0.0
    %167 = vmatpush2.msra.mxu0 0.0
    %168 = vmatprep.subr.mxu0 0.0
    %169 = vmatpush2.msra.mxu0 0.0
    %170 = vmatprep.subr.mxu0 0.0
    %171 = vmatpush2.msra.mxu0 0.0
    %172 = vmatprep.mubr.f32.mxu0 0.0
    %173 = vmatmul.mubr.f32.gmra.mxu0 %v106
    %v174 = vpop.f32.mrf.mxu0
    %v175 = vadd.f32 0.0, %v174
    %v176 = vpop.f32.mrf.mxu0
    %v177 = vadd.f32 0.0, %v176
    %178 = vdwg.mxu0
    %179 = vmatprep.subr.mxu0 0.0
    %180 = vmatpush1.msra.mxu0 0.0
    %181 = vmatprep.subr.mxu0 0.0
    %182 = vmatpush1.msra.mxu0 0.0
    %183 = vmatprep.subr.mxu0 0.0
    %184 = vmatpush1.msra.mxu0 0.0
    %185 = vmatprep.subr.mxu0 0.0
    %186 = vmatpush1.msra.mxu0 0.0
    %187 = vmatprep.subr.mxu0 0.0
    %188 = vmatpush1.msra.mxu0 0.0
    %189 = vmatprep.subr.mxu0 0.0
    %190 = vmatpush1.msra.mxu0 0.0
    %191 = vmatprep.subr.mxu0 0.0
    %192 = vmatpush1.msra.mxu0 0.0
    %193 = vmatprep.subr.mxu0 0.0
    %194 = vmatpush1.msra.mxu0 0.0
    %195 = vmatprep.subr.mxu0 0.0
    %196 = vmatpush1.msra.mxu0 0.0
    %197 = vmatprep.subr.mxu0 0.0
    %198 = vmatpush1.msra.mxu0 0.0
    %199 = vmatprep.subr.mxu0 0.0
    %200 = vmatpush1.msra.mxu0 0.0
    %201 = vmatprep.subr.mxu0 0.0
    %202 = vmatpush1.msra.mxu0 0.0
    %203 = vmatprep.subr.mxu0 0.0
    %204 = vmatpush1.msra.mxu0 0.0
    %205 = vmatprep.subr.mxu0 0.0
    %206 = vmatpush1.msra.mxu0 0.0
    %207 = vmatprep.subr.mxu0 0.0
    %208 = vmatpush1.msra.mxu0 0.0
    %209 = vmatprep.subr.mxu0 %v103
    %210 = vmatpush1.msra.mxu0 %v102
    %211 = vmatprep.subr.mxu0 0.0
    %212 = vmatpush2.msra.mxu0 0.0
    %213 = vmatprep.subr.mxu0 0.0
    %214 = vmatpush2.msra.mxu0 0.0
    %215 = vmatprep.subr.mxu0 0.0
    %216 = vmatpush2.msra.mxu0 0.0
    %217 = vmatprep.subr.mxu0 0.0
    %218 = vmatpush2.msra.mxu0 0.0
    %219 = vmatprep.subr.mxu0 0.0
    %220 = vmatpush2.msra.mxu0 0.0
    %221 = vmatprep.subr.mxu0 0.0
    %222 = vmatpush2.msra.mxu0 0.0
    %223 = vmatprep.subr.mxu0 0.0
    %224 = vmatpush2.msra.mxu0 0.0
    %225 = vmatprep.subr.mxu0 0.0
    %226 = vmatpush2.msra.mxu0 0.0
    %227 = vmatprep.subr.mxu0 0.0
    %228 = vmatpush2.msra.mxu0 0.0
    %229 = vmatprep.subr.mxu0 0.0
    %230 = vmatpush2.msra.mxu0 0.0
    %231 = vmatprep.subr.mxu0 0.0
    %232 = vmatpush2.msra.mxu0 0.0
    %233 = vmatprep.subr.mxu0 0.0
    %234 = vmatpush2.msra.mxu0 0.0
    %235 = vmatprep.subr.mxu0 0.0
    %236 = vmatpush2.msra.mxu0 0.0
    %237 = vmatprep.subr.mxu0 0.0
    %238 = vmatpush2.msra.mxu0 0.0
    %239 = vmatprep.subr.mxu0 0.0
    %240 = vmatpush2.msra.mxu0 0.0
    %241 = vmatprep.subr.mxu0 0.0
    %242 = vmatpush2.msra.mxu0 0.0
    %243 = vmatprep.mubr.f32.mxu0 0.0
    %244 = vmatmul.mubr.f32.gmra.mxu0 %v106
    %v245 = vpop.f32.mrf.mxu0
    %v246 = vadd.f32 0.0, %v245
    %v247 = vpop.f32.mrf.mxu0
    %v248 = vadd.f32 0.0, %v247
    %249 = vdwg.mxu0
    %v251 = vsel %vm104, %v94, 0
    %253 = vmatprep.subr.mxu0 0.0
    %254 = vmatpush1.msra.mxu0 0.0
    %255 = vmatprep.subr.mxu0 0.0
    %256 = vmatpush1.msra.mxu0 0.0
    %257 = vmatprep.subr.mxu0 0.0
    %258 = vmatpush1.msra.mxu0 0.0
    %259 = vmatprep.subr.mxu0 0.0
    %260 = vmatpush1.msra.mxu0 0.0
    %261 = vmatprep.subr.mxu0 0.0
    %262 = vmatpush1.msra.mxu0 0.0
    %263 = vmatprep.subr.mxu0 0.0
    %264 = vmatpush1.msra.mxu0 0.0
    %265 = vmatprep.subr.mxu0 0.0
    %266 = vmatpush1.msra.mxu0 0.0
    %267 = vmatprep.subr.mxu0 0.0
    %268 = vmatpush1.msra.mxu0 0.0
    %269 = vmatprep.subr.mxu0 0.0
    %270 = vmatpush1.msra.mxu0 0.0
    %271 = vmatprep.subr.mxu0 0.0
    %272 = vmatpush1.msra.mxu0 0.0
    %273 = vmatprep.subr.mxu0 0.0
    %274 = vmatpush1.msra.mxu0 0.0
    %275 = vmatprep.subr.mxu0 0.0
    %276 = vmatpush1.msra.mxu0 0.0
    %277 = vmatprep.subr.mxu0 0.0
    %278 = vmatpush1.msra.mxu0 0.0
    %279 = vmatprep.subr.mxu0 0.0
    %280 = vmatpush1.msra.mxu0 0.0
    %281 = vmatprep.subr.mxu0 0.0
    %282 = vmatpush1.msra.mxu0 0.0
    %283 = vmatprep.subr.mxu0 %v97
    %284 = vmatpush1.msra.mxu0 %v96
    %285 = vmatprep.subr.mxu0 0.0
    %286 = vmatpush2.msra.mxu0 0.0
    %287 = vmatprep.subr.mxu0 0.0
    %288 = vmatpush2.msra.mxu0 0.0
    %289 = vmatprep.subr.mxu0 0.0
    %290 = vmatpush2.msra.mxu0 0.0
    %291 = vmatprep.subr.mxu0 0.0
    %292 = vmatpush2.msra.mxu0 0.0
    %293 = vmatprep.subr.mxu0 0.0
    %294 = vmatpush2.msra.mxu0 0.0
    %295 = vmatprep.subr.mxu0 0.0
    %296 = vmatpush2.msra.mxu0 0.0
    %297 = vmatprep.subr.mxu0 0.0
    %298 = vmatpush2.msra.mxu0 0.0
    %299 = vmatprep.subr.mxu0 0.0
    %300 = vmatpush2.msra.mxu0 0.0
    %301 = vmatprep.subr.mxu0 0.0
    %302 = vmatpush2.msra.mxu0 0.0
    %303 = vmatprep.subr.mxu0 0.0
    %304 = vmatpush2.msra.mxu0 0.0
    %305 = vmatprep.subr.mxu0 0.0
    %306 = vmatpush2.msra.mxu0 0.0
    %307 = vmatprep.subr.mxu0 0.0
    %308 = vmatpush2.msra.mxu0 0.0
    %309 = vmatprep.subr.mxu0 0.0
    %310 = vmatpush2.msra.mxu0 0.0
    %311 = vmatprep.subr.mxu0 0.0
    %312 = vmatpush2.msra.mxu0 0.0
    %313 = vmatprep.subr.mxu0 0.0
    %314 = vmatpush2.msra.mxu0 0.0
    %315 = vmatprep.subr.mxu0 0.0
    %316 = vmatpush2.msra.mxu0 0.0
    %317 = vmatprep.mubr.f32.mxu0 0.0
    %318 = vmatmul.mubr.f32.gmra.mxu0 %v251
    %v319 = vpop.f32.mrf.mxu0
    %v320 = vadd.f32 %v175, %v319
    %v321 = vpop.f32.mrf.mxu0
    %v322 = vadd.f32 %v177, %v321
    %323 = vdwg.mxu0
    %324 = vmatprep.subr.mxu0 0.0
    %325 = vmatpush1.msra.mxu0 0.0
    %326 = vmatprep.subr.mxu0 0.0
    %327 = vmatpush1.msra.mxu0 0.0
    %328 = vmatprep.subr.mxu0 0.0
    %329 = vmatpush1.msra.mxu0 0.0
    %330 = vmatprep.subr.mxu0 0.0
    %331 = vmatpush1.msra.mxu0 0.0
    %332 = vmatprep.subr.mxu0 0.0
    %333 = vmatpush1.msra.mxu0 0.0
    %334 = vmatprep.subr.mxu0 0.0
    %335 = vmatpush1.msra.mxu0 0.0
    %336 = vmatprep.subr.mxu0 0.0
    %337 = vmatpush1.msra.mxu0 0.0
    %338 = vmatprep.subr.mxu0 0.0
    %339 = vmatpush1.msra.mxu0 0.0
    %340 = vmatprep.subr.mxu0 0.0
    %341 = vmatpush1.msra.mxu0 0.0
    %342 = vmatprep.subr.mxu0 0.0
    %343 = vmatpush1.msra.mxu0 0.0
    %344 = vmatprep.subr.mxu0 0.0
    %345 = vmatpush1.msra.mxu0 0.0
    %346 = vmatprep.subr.mxu0 0.0
    %347 = vmatpush1.msra.mxu0 0.0
    %348 = vmatprep.subr.mxu0 0.0
    %349 = vmatpush1.msra.mxu0 0.0
    %350 = vmatprep.subr.mxu0 0.0
    %351 = vmatpush1.msra.mxu0 0.0
    %352 = vmatprep.subr.mxu0 0.0
    %353 = vmatpush1.msra.mxu0 0.0
    %354 = vmatprep.subr.mxu0 %v99
    %355 = vmatpush1.msra.mxu0 %v98
    %356 = vmatprep.subr.mxu0 0.0
    %357 = vmatpush2.msra.mxu0 0.0
    %358 = vmatprep.subr.mxu0 0.0
    %359 = vmatpush2.msra.mxu0 0.0
    %360 = vmatprep.subr.mxu0 0.0
    %361 = vmatpush2.msra.mxu0 0.0
    %362 = vmatprep.subr.mxu0 0.0
    %363 = vmatpush2.msra.mxu0 0.0
    %364 = vmatprep.subr.mxu0 0.0
    %365 = vmatpush2.msra.mxu0 0.0
    %366 = vmatprep.subr.mxu0 0.0
    %367 = vmatpush2.msra.mxu0 0.0
    %368 = vmatprep.subr.mxu0 0.0
    %369 = vmatpush2.msra.mxu0 0.0
    %370 = vmatprep.subr.mxu0 0.0
    %371 = vmatpush2.msra.mxu0 0.0
    %372 = vmatprep.subr.mxu0 0.0
    %373 = vmatpush2.msra.mxu0 0.0
    %374 = vmatprep.subr.mxu0 0.0
    %375 = vmatpush2.msra.mxu0 0.0
    %376 = vmatprep.subr.mxu0 0.0
    %377 = vmatpush2.msra.mxu0 0.0
    %378 = vmatprep.subr.mxu0 0.0
    %379 = vmatpush2.msra.mxu0 0.0
    %380 = vmatprep.subr.mxu0 0.0
    %381 = vmatpush2.msra.mxu0 0.0
    %382 = vmatprep.subr.mxu0 0.0
    %383 = vmatpush2.msra.mxu0 0.0
    %384 = vmatprep.subr.mxu0 0.0
    %385 = vmatpush2.msra.mxu0 0.0
    %386 = vmatprep.subr.mxu0 0.0
    %387 = vmatpush2.msra.mxu0 0.0
    %388 = vmatprep.mubr.f32.mxu0 0.0
    %389 = vmatmul.mubr.f32.gmra.mxu0 %v251
    %v390 = vpop.f32.mrf.mxu0
    %v391 = vadd.f32 %v246, %v390
    %v392 = vpop.f32.mrf.mxu0
    %v393 = vadd.f32 %v248, %v392
    %394 = vdwg.mxu0
    %v395 = vld [vmem:[%s4] sm:$0xf]
    %v397 = vlaneseq
    %v398 = vshrl.u32 %v397, 7
    %v399 = vsub.s32 0, %v398
    %v400 = vrot.slane %v395, %v399
    %v401 = vlaneseq
    %v402 = vshrl.u32 %v401, 7
    %v403 = vsub.s32 1, %v402
    %v404 = vrot.slane %v395, %v403
    %v405 = vlaneseq
    %v406 = vshrl.u32 %v405, 7
    %v407 = vsub.s32 2, %v406
    %v408 = vrot.slane %v395, %v407
    %v409 = vlaneseq
    %v410 = vshrl.u32 %v409, 7
    %v411 = vsub.s32 3, %v410
    %v412 = vrot.slane %v395, %v411
    %v417 = vadd.f32 %v320, %v400
    %v418 = vadd.f32 %v322, %v404
    %v419 = vadd.f32 %v391, %v408
    %v420 = vadd.f32 %v393, %v412
    %v421 = vmax.f32 %v417, 0.0
    %v422 = vmax.f32 %v418, 0.0
    %v423 = vmax.f32 %v419, 0.0
    %v424 = vmax.f32 %v420, 0.0
    %v425 = vld [vmem:[#allocation10] sm:$0xff]
    %v426 = vld [vmem:[#allocation10 + $0x8] sm:$0xff]
    %v427 = vld [vmem:[#allocation10 + $0x10] sm:$0xff]
    %v428 = vld [vmem:[#allocation10 + $0x18] sm:$0xff]
    %v429 = vld [vmem:[#allocation10 + $0x20] sm:$0xff]
    %v430 = vld [vmem:[#allocation10 + $0x28] sm:$0xff]
    %v431 = vld [vmem:[#allocation10 + $0x30] sm:$0xff]
    %v432 = vld [vmem:[#allocation10 + $0x38] sm:$0xff]
    %v433 = vld [vmem:[#allocation10 + $0x40] sm:$0xff]
    %v434 = vld [vmem:[#allocation10 + $0x48] sm:$0xff]
    %v435 = vld [vmem:[#allocation10 + $0x50] sm:$0xff]
    %v436 = vld [vmem:[#allocation10 + $0x58] sm:$0xff]
    %v437 = vld [vmem:[#allocation10 + $0x60] sm:$0xff]
    %v438 = vld [vmem:[#allocation10 + $0x68] sm:$0xff]
    %v439 = vld [vmem:[#allocation10 + $0x70] sm:$0xff]
    %v440 = vld [vmem:[#allocation10 + $0x78] sm:$0xff]
    %v441 = vld [vmem:[#allocation10 + $0x80] sm:$0xff]
    %v442 = vld [vmem:[#allocation10 + $0x88] sm:$0xff]
    %v443 = vld [vmem:[#allocation10 + $0x90] sm:$0xff]
    %v444 = vld [vmem:[#allocation10 + $0x98] sm:$0xff]
    %v445 = vld [vmem:[#allocation10 + $0xa0] sm:$0xff]
    %v446 = vld [vmem:[#allocation10 + $0xa8] sm:$0xff]
    %v447 = vld [vmem:[#allocation10 + $0xb0] sm:$0xff]
    %v448 = vld [vmem:[#allocation10 + $0xb8] sm:$0xff]
    %v449 = vld [vmem:[#allocation10 + $0xc0] sm:$0xff]
    %v450 = vld [vmem:[#allocation10 + $0xc8] sm:$0xff]
    %v451 = vld [vmem:[#allocation10 + $0xd0] sm:$0xff]
    %v452 = vld [vmem:[#allocation10 + $0xd8] sm:$0xff]
    %v453 = vld [vmem:[#allocation10 + $0xe0] sm:$0xff]
    %v454 = vld [vmem:[#allocation10 + $0xe8] sm:$0xff]
    %v455 = vld [vmem:[#allocation10 + $0xf0] sm:$0xff]
    %v456 = vld [vmem:[#allocation10 + $0xf8] sm:$0xff]
    %v457 = vld [vmem:[#allocation10 + $0x100] sm:$0xff]
    %v458 = vld [vmem:[#allocation10 + $0x108] sm:$0xff]
    %v459 = vld [vmem:[#allocation10 + $0x110] sm:$0xff]
    %v460 = vld [vmem:[#allocation10 + $0x118] sm:$0xff]
    %v461 = vld [vmem:[#allocation10 + $0x120] sm:$0xff]
    %v462 = vld [vmem:[#allocation10 + $0x128] sm:$0xff]
    %v463 = vld [vmem:[#allocation10 + $0x130] sm:$0xff]
    %v464 = vld [vmem:[#allocation10 + $0x138] sm:$0xff]
    %v465 = vld [vmem:[#allocation10 + $0x140] sm:$0xff]
    %v466 = vld [vmem:[#allocation10 + $0x148] sm:$0xff]
    %v467 = vld [vmem:[#allocation10 + $0x150] sm:$0xff]
    %v468 = vld [vmem:[#allocation10 + $0x158] sm:$0xff]
    %v469 = vld [vmem:[#allocation10 + $0x160] sm:$0xff]
    %v470 = vld [vmem:[#allocation10 + $0x168] sm:$0xff]
    %v471 = vld [vmem:[#allocation10 + $0x170] sm:$0xff]
    %v472 = vld [vmem:[#allocation10 + $0x178] sm:$0xff]
    %v473 = vld [vmem:[#allocation10 + $0x180] sm:$0xff]
    %v474 = vld [vmem:[#allocation10 + $0x188] sm:$0xff]
    %v475 = vld [vmem:[#allocation10 + $0x190] sm:$0xff]
    %v476 = vld [vmem:[#allocation10 + $0x198] sm:$0xff]
    %v477 = vld [vmem:[#allocation10 + $0x1a0] sm:$0xff]
    %v478 = vld [vmem:[#allocation10 + $0x1a8] sm:$0xff]
    %v479 = vld [vmem:[#allocation10 + $0x1b0] sm:$0xff]
    %v480 = vld [vmem:[#allocation10 + $0x1b8] sm:$0xff]
    %v481 = vld [vmem:[#allocation10 + $0x1c0] sm:$0xff]
    %v482 = vld [vmem:[#allocation10 + $0x1c8] sm:$0xff]
    %v483 = vld [vmem:[#allocation10 + $0x1d0] sm:$0xff]
    %v484 = vld [vmem:[#allocation10 + $0x1d8] sm:$0xff]
    %v485 = vld [vmem:[#allocation10 + $0x1e0] sm:$0xff]
    %v486 = vld [vmem:[#allocation10 + $0x1e8] sm:$0xff]
    %v487 = vld [vmem:[#allocation10 + $0x1f0] sm:$0xff]
    %v488 = vld [vmem:[#allocation10 + $0x1f8] sm:$0xff]
    %v489 = vld [vmem:[#allocation10 + $0x200] sm:$0xff]
    %v490 = vld [vmem:[#allocation10 + $0x208] sm:$0xff]
    %v491 = vld [vmem:[#allocation10 + $0x210] sm:$0xff]
    %v492 = vld [vmem:[#allocation10 + $0x218] sm:$0xff]
    %v493 = vld [vmem:[#allocation10 + $0x220] sm:$0xff]
    %v494 = vld [vmem:[#allocation10 + $0x228] sm:$0xff]
    %v495 = vld [vmem:[#allocation10 + $0x230] sm:$0xff]
    %v496 = vld [vmem:[#allocation10 + $0x238] sm:$0xff]
    %v497 = vld [vmem:[#allocation10 + $0x240] sm:$0xff]
    %v498 = vld [vmem:[#allocation10 + $0x248] sm:$0xff]
    %v499 = vld [vmem:[#allocation10 + $0x250] sm:$0xff]
    %v500 = vld [vmem:[#allocation10 + $0x258] sm:$0xff]
    %v501 = vld [vmem:[#allocation10 + $0x260] sm:$0xff]
    %v502 = vld [vmem:[#allocation10 + $0x268] sm:$0xff]
    %v503 = vld [vmem:[#allocation10 + $0x270] sm:$0xff]
    %v504 = vld [vmem:[#allocation10 + $0x278] sm:$0xff]
    %v505 = vld [vmem:[#allocation10 + $0x280] sm:$0xff]
    %v506 = vld [vmem:[#allocation10 + $0x288] sm:$0xff]
    %v507 = vld [vmem:[#allocation10 + $0x290] sm:$0xff]
    %v508 = vld [vmem:[#allocation10 + $0x298] sm:$0xff]
    %v509 = vld [vmem:[#allocation10 + $0x2a0] sm:$0xff]
    %v510 = vld [vmem:[#allocation10 + $0x2a8] sm:$0xff]
    %v511 = vld [vmem:[#allocation10 + $0x2b0] sm:$0xff]
    %v512 = vld [vmem:[#allocation10 + $0x2b8] sm:$0xff]
    %v513 = vld [vmem:[#allocation10 + $0x2c0] sm:$0xff]
    %v514 = vld [vmem:[#allocation10 + $0x2c8] sm:$0xff]
    %v515 = vld [vmem:[#allocation10 + $0x2d0] sm:$0xff]
    %v516 = vld [vmem:[#allocation10 + $0x2d8] sm:$0xff]
    %v517 = vld [vmem:[#allocation10 + $0x2e0] sm:$0xff]
    %v518 = vld [vmem:[#allocation10 + $0x2e8] sm:$0xff]
    %v519 = vld [vmem:[#allocation10 + $0x2f0] sm:$0xff]
    %v520 = vld [vmem:[#allocation10 + $0x2f8] sm:$0xff]
    %v521 = vld [vmem:[#allocation10 + $0x300] sm:$0xff]
    %v522 = vld [vmem:[#allocation10 + $0x308] sm:$0xff]
    %v523 = vld [vmem:[#allocation10 + $0x310] sm:$0xff]
    %v524 = vld [vmem:[#allocation10 + $0x318] sm:$0xff]
    %v525 = vld [vmem:[#allocation10 + $0x320] sm:$0xff]
    %v526 = vld [vmem:[#allocation10 + $0x328] sm:$0xff]
    %v527 = vld [vmem:[#allocation10 + $0x330] sm:$0xff]
    %v528 = vld [vmem:[#allocation10 + $0x338] sm:$0xff]
    %v529 = vld [vmem:[#allocation10 + $0x340] sm:$0xff]
    %v530 = vld [vmem:[#allocation10 + $0x348] sm:$0xff]
    %v531 = vld [vmem:[#allocation10 + $0x350] sm:$0xff]
    %v532 = vld [vmem:[#allocation10 + $0x358] sm:$0xff]
    %v533 = vld [vmem:[#allocation10 + $0x360] sm:$0xff]
    %v534 = vld [vmem:[#allocation10 + $0x368] sm:$0xff]
    %v535 = vld [vmem:[#allocation10 + $0x370] sm:$0xff]
    %v536 = vld [vmem:[#allocation10 + $0x378] sm:$0xff]
    %v537 = vld [vmem:[#allocation10 + $0x380] sm:$0xff]
    %v538 = vld [vmem:[#allocation10 + $0x388] sm:$0xff]
    %v539 = vld [vmem:[#allocation10 + $0x390] sm:$0xff]
    %v540 = vld [vmem:[#allocation10 + $0x398] sm:$0xff]
    %v541 = vld [vmem:[#allocation10 + $0x3a0] sm:$0xff]
    %v542 = vld [vmem:[#allocation10 + $0x3a8] sm:$0xff]
    %v543 = vld [vmem:[#allocation10 + $0x3b0] sm:$0xff]
    %v544 = vld [vmem:[#allocation10 + $0x3b8] sm:$0xff]
    %v545 = vld [vmem:[#allocation10 + $0x3c0] sm:$0xff]
    %v546 = vld [vmem:[#allocation10 + $0x3c8] sm:$0xff]
    %v547 = vld [vmem:[#allocation10 + $0x3d0] sm:$0xff]
    %v548 = vld [vmem:[#allocation10 + $0x3d8] sm:$0xff]
    %v549 = vld [vmem:[#allocation10 + $0x3e0] sm:$0xff]
    %v550 = vld [vmem:[#allocation10 + $0x3e8] sm:$0xff]
    %v551 = vld [vmem:[#allocation10 + $0x3f0] sm:$0xff]
    %v552 = vld [vmem:[#allocation10 + $0x3f8] sm:$0xff]
    %v553 = vld [vmem:[#allocation10 + $0x400] sm:$0xff]
    %v554 = vld [vmem:[#allocation10 + $0x408] sm:$0xff]
    %v555 = vld [vmem:[#allocation10 + $0x410] sm:$0xff]
    %v556 = vld [vmem:[#allocation10 + $0x418] sm:$0xff]
    %v557 = vld [vmem:[#allocation10 + $0x420] sm:$0xff]
    %v558 = vld [vmem:[#allocation10 + $0x428] sm:$0xff]
    %v559 = vld [vmem:[#allocation10 + $0x430] sm:$0xff]
    %v560 = vld [vmem:[#allocation10 + $0x438] sm:$0xff]
    %v561 = vld [vmem:[#allocation10 + $0x440] sm:$0xff]
    %v562 = vld [vmem:[#allocation10 + $0x448] sm:$0xff]
    %v563 = vld [vmem:[#allocation10 + $0x450] sm:$0xff]
    %v564 = vld [vmem:[#allocation10 + $0x458] sm:$0xff]
    %v565 = vld [vmem:[#allocation10 + $0x460] sm:$0xff]
    %v566 = vld [vmem:[#allocation10 + $0x468] sm:$0xff]
    %v567 = vld [vmem:[#allocation10 + $0x470] sm:$0xff]
    %v568 = vld [vmem:[#allocation10 + $0x478] sm:$0xff]
    %v569 = vld [vmem:[#allocation10 + $0x480] sm:$0xff]
    %v570 = vld [vmem:[#allocation10 + $0x488] sm:$0xff]
    %v571 = vld [vmem:[#allocation10 + $0x490] sm:$0xff]
    %v572 = vld [vmem:[#allocation10 + $0x498] sm:$0xff]
    %v573 = vld [vmem:[#allocation10 + $0x4a0] sm:$0xff]
    %v574 = vld [vmem:[#allocation10 + $0x4a8] sm:$0xff]
    %v575 = vld [vmem:[#allocation10 + $0x4b0] sm:$0xff]
    %v576 = vld [vmem:[#allocation10 + $0x4b8] sm:$0xff]
    %v577 = vld [vmem:[#allocation10 + $0x4c0] sm:$0xff]
    %v578 = vld [vmem:[#allocation10 + $0x4c8] sm:$0xff]
    %v579 = vld [vmem:[#allocation10 + $0x4d0] sm:$0xff]
    %v580 = vld [vmem:[#allocation10 + $0x4d8] sm:$0xff]
    %v581 = vld [vmem:[#allocation10 + $0x4e0] sm:$0xff]
    %v582 = vld [vmem:[#allocation10 + $0x4e8] sm:$0xff]
    %v583 = vld [vmem:[#allocation10 + $0x4f0] sm:$0xff]
    %v584 = vld [vmem:[#allocation10 + $0x4f8] sm:$0xff]
    %v585 = vld [vmem:[#allocation10 + $0x500] sm:$0xff]
    %v586 = vld [vmem:[#allocation10 + $0x508] sm:$0xff]
    %v587 = vld [vmem:[#allocation10 + $0x510] sm:$0xff]
    %v588 = vld [vmem:[#allocation10 + $0x518] sm:$0xff]
    %v589 = vld [vmem:[#allocation10 + $0x520] sm:$0xff]
    %v590 = vld [vmem:[#allocation10 + $0x528] sm:$0xff]
    %v591 = vld [vmem:[#allocation10 + $0x530] sm:$0xff]
    %v592 = vld [vmem:[#allocation10 + $0x538] sm:$0xff]
    %v593 = vld [vmem:[#allocation10 + $0x540] sm:$0xff]
    %v594 = vld [vmem:[#allocation10 + $0x548] sm:$0xff]
    %v595 = vld [vmem:[#allocation10 + $0x550] sm:$0xff]
    %v596 = vld [vmem:[#allocation10 + $0x558] sm:$0xff]
    %v597 = vld [vmem:[#allocation10 + $0x560] sm:$0xff]
    %v598 = vld [vmem:[#allocation10 + $0x568] sm:$0xff]
    %v599 = vld [vmem:[#allocation10 + $0x570] sm:$0xff]
    %v600 = vld [vmem:[#allocation10 + $0x578] sm:$0xff]
    %v601 = vld [vmem:[#allocation10 + $0x580] sm:$0xff]
    %v602 = vld [vmem:[#allocation10 + $0x588] sm:$0xff]
    %v603 = vld [vmem:[#allocation10 + $0x590] sm:$0xff]
    %v604 = vld [vmem:[#allocation10 + $0x598] sm:$0xff]
    %v605 = vld [vmem:[#allocation10 + $0x5a0] sm:$0xff]
    %v606 = vld [vmem:[#allocation10 + $0x5a8] sm:$0xff]
    %v607 = vld [vmem:[#allocation10 + $0x5b0] sm:$0xff]
    %v608 = vld [vmem:[#allocation10 + $0x5b8] sm:$0xff]
    %v609 = vld [vmem:[#allocation10 + $0x5c0] sm:$0xff]
    %v610 = vld [vmem:[#allocation10 + $0x5c8] sm:$0xff]
    %v611 = vld [vmem:[#allocation10 + $0x5d0] sm:$0xff]
    %v612 = vld [vmem:[#allocation10 + $0x5d8] sm:$0xff]
    %v613 = vld [vmem:[#allocation10 + $0x5e0] sm:$0xff]
    %v614 = vld [vmem:[#allocation10 + $0x5e8] sm:$0xff]
    %v615 = vld [vmem:[#allocation10 + $0x5f0] sm:$0xff]
    %v616 = vld [vmem:[#allocation10 + $0x5f8] sm:$0xff]
    %v617 = vld [vmem:[%s6] sm:$0x7]
    %v619 = vlaneseq
    %v620 = vshrl.u32 %v619, 7
    %v621 = vsub.s32 0, %v620
    %v622 = vrot.slane %v617, %v621
    %v623 = vlaneseq
    %v624 = vshrl.u32 %v623, 7
    %v625 = vsub.s32 1, %v624
    %v626 = vrot.slane %v617, %v625
    %v627 = vlaneseq
    %v628 = vshrl.u32 %v627, 7
    %v629 = vsub.s32 2, %v628
    %v630 = vrot.slane %v617, %v629
    %634 = vmatprep.subr.mxu0 %v471
    %635 = vmatpush1.msra.mxu0 %v470
    %636 = vmatprep.subr.mxu0 %v468
    %637 = vmatpush1.msra.mxu0 %v467
    %638 = vmatprep.subr.mxu0 %v465
    %639 = vmatpush1.msra.mxu0 %v464
    %640 = vmatprep.subr.mxu0 %v462
    %641 = vmatpush1.msra.mxu0 %v461
    %642 = vmatprep.subr.mxu0 %v459
    %643 = vmatpush1.msra.mxu0 %v458
    %644 = vmatprep.subr.mxu0 %v456
    %645 = vmatpush1.msra.mxu0 %v455
    %646 = vmatprep.subr.mxu0 %v453
    %647 = vmatpush1.msra.mxu0 %v452
    %648 = vmatprep.subr.mxu0 %v450
    %649 = vmatpush1.msra.mxu0 %v449
    %650 = vmatprep.subr.mxu0 %v447
    %651 = vmatpush1.msra.mxu0 %v446
    %652 = vmatprep.subr.mxu0 %v444
    %653 = vmatpush1.msra.mxu0 %v443
    %654 = vmatprep.subr.mxu0 %v441
    %655 = vmatpush1.msra.mxu0 %v440
    %656 = vmatprep.subr.mxu0 %v438
    %657 = vmatpush1.msra.mxu0 %v437
    %658 = vmatprep.subr.mxu0 %v435
    %659 = vmatpush1.msra.mxu0 %v434
    %660 = vmatprep.subr.mxu0 %v432
    %661 = vmatpush1.msra.mxu0 %v431
    %662 = vmatprep.subr.mxu0 %v429
    %663 = vmatpush1.msra.mxu0 %v428
    %664 = vmatprep.subr.mxu0 %v426
    %665 = vmatpush1.msra.mxu0 %v425
    %666 = vmatprep.subr.mxu0 %v519
    %667 = vmatpush2.msra.mxu0 %v518
    %668 = vmatprep.subr.mxu0 %v516
    %669 = vmatpush2.msra.mxu0 %v515
    %670 = vmatprep.subr.mxu0 %v513
    %671 = vmatpush2.msra.mxu0 %v512
    %672 = vmatprep.subr.mxu0 %v510
    %673 = vmatpush2.msra.mxu0 %v509
    %674 = vmatprep.subr.mxu0 %v507
    %675 = vmatpush2.msra.mxu0 %v506
    %676 = vmatprep.subr.mxu0 %v504
    %677 = vmatpush2.msra.mxu0 %v503
    %678 = vmatprep.subr.mxu0 %v501
    %679 = vmatpush2.msra.mxu0 %v500
    %680 = vmatprep.subr.mxu0 %v498
    %681 = vmatpush2.msra.mxu0 %v497
    %682 = vmatprep.subr.mxu0 %v495
    %683 = vmatpush2.msra.mxu0 %v494
    %684 = vmatprep.subr.mxu0 %v492
    %685 = vmatpush2.msra.mxu0 %v491
    %686 = vmatprep.subr.mxu0 %v489
    %687 = vmatpush2.msra.mxu0 %v488
    %688 = vmatprep.subr.mxu0 %v486
    %689 = vmatpush2.msra.mxu0 %v485
    %690 = vmatprep.subr.mxu0 %v483
    %691 = vmatpush2.msra.mxu0 %v482
    %692 = vmatprep.subr.mxu0 %v480
    %693 = vmatpush2.msra.mxu0 %v479
    %694 = vmatprep.subr.mxu0 %v477
    %695 = vmatpush2.msra.mxu0 %v476
    %696 = vmatprep.subr.mxu0 %v474
    %697 = vmatpush2.msra.mxu0 %v473
    %698 = vmatprep.mubr.f32.mxu0 %v422
    %699 = vmatmul.mubr.f32.gmra.mxu0 %v421
    %v700 = vpop.f32.mrf.mxu0
    %v701 = vadd.f32 %v622, %v700
    %v702 = vpop.f32.mrf.mxu0
    %v703 = vadd.f32 %v626, %v702
    %704 = vdwg.mxu0
    %705 = vmatprep.subr.mxu0 %v567
    %706 = vmatpush1.msra.mxu0 %v566
    %707 = vmatprep.subr.mxu0 %v564
    %708 = vmatpush1.msra.mxu0 %v563
    %709 = vmatprep.subr.mxu0 %v561
    %710 = vmatpush1.msra.mxu0 %v560
    %711 = vmatprep.subr.mxu0 %v558
    %712 = vmatpush1.msra.mxu0 %v557
    %713 = vmatprep.subr.mxu0 %v555
    %714 = vmatpush1.msra.mxu0 %v554
    %715 = vmatprep.subr.mxu0 %v552
    %716 = vmatpush1.msra.mxu0 %v551
    %717 = vmatprep.subr.mxu0 %v549
    %718 = vmatpush1.msra.mxu0 %v548
    %719 = vmatprep.subr.mxu0 %v546
    %720 = vmatpush1.msra.mxu0 %v545
    %721 = vmatprep.subr.mxu0 %v543
    %722 = vmatpush1.msra.mxu0 %v542
    %723 = vmatprep.subr.mxu0 %v540
    %724 = vmatpush1.msra.mxu0 %v539
    %725 = vmatprep.subr.mxu0 %v537
    %726 = vmatpush1.msra.mxu0 %v536
    %727 = vmatprep.subr.mxu0 %v534
    %728 = vmatpush1.msra.mxu0 %v533
    %729 = vmatprep.subr.mxu0 %v531
    %730 = vmatpush1.msra.mxu0 %v530
    %731 = vmatprep.subr.mxu0 %v528
    %732 = vmatpush1.msra.mxu0 %v527
    %733 = vmatprep.subr.mxu0 %v525
    %734 = vmatpush1.msra.mxu0 %v524
    %735 = vmatprep.subr.mxu0 %v522
    %736 = vmatpush1.msra.mxu0 %v521
    %737 = vmatprep.subr.mxu0 %v615
    %738 = vmatpush2.msra.mxu0 %v614
    %739 = vmatprep.subr.mxu0 %v612
    %740 = vmatpush2.msra.mxu0 %v611
    %741 = vmatprep.subr.mxu0 %v609
    %742 = vmatpush2.msra.mxu0 %v608
    %743 = vmatprep.subr.mxu0 %v606
    %744 = vmatpush2.msra.mxu0 %v605
    %745 = vmatprep.subr.mxu0 %v603
    %746 = vmatpush2.msra.mxu0 %v602
    %747 = vmatprep.subr.mxu0 %v600
    %748 = vmatpush2.msra.mxu0 %v599
    %749 = vmatprep.subr.mxu0 %v597
    %750 = vmatpush2.msra.mxu0 %v596
    %751 = vmatprep.subr.mxu0 %v594
    %752 = vmatpush2.msra.mxu0 %v593
    %753 = vmatprep.subr.mxu0 %v591
    %754 = vmatpush2.msra.mxu0 %v590
    %755 = vmatprep.subr.mxu0 %v588
    %756 = vmatpush2.msra.mxu0 %v587
    %757 = vmatprep.subr.mxu0 %v585
    %758 = vmatpush2.msra.mxu0 %v584
    %759 = vmatprep.subr.mxu0 %v582
    %760 = vmatpush2.msra.mxu0 %v581
    %761 = vmatprep.subr.mxu0 %v579
    %762 = vmatpush2.msra.mxu0 %v578
    %763 = vmatprep.subr.mxu0 %v576
    %764 = vmatpush2.msra.mxu0 %v575
    %765 = vmatprep.subr.mxu0 %v573
    %766 = vmatpush2.msra.mxu0 %v572
    %767 = vmatprep.subr.mxu0 %v570
    %768 = vmatpush2.msra.mxu0 %v569
    %769 = vmatprep.mubr.f32.mxu0 %v424
    %770 = vmatmul.mubr.f32.gmra.mxu0 %v423
    %v771 = vpop.f32.mrf.mxu0
    %v772 = vadd.f32 %v701, %v771
    %v773 = vpop.f32.mrf.mxu0
    %v774 = vadd.f32 %v703, %v773
    %775 = vdwg.mxu0
    %776 = vmatprep.subr.mxu0 0.0
    %777 = vmatpush1.msra.mxu0 %v472
    %778 = vmatprep.subr.mxu0 0.0
    %779 = vmatpush1.msra.mxu0 %v469
    %780 = vmatprep.subr.mxu0 0.0
    %781 = vmatpush1.msra.mxu0 %v466
    %782 = vmatprep.subr.mxu0 0.0
    %783 = vmatpush1.msra.mxu0 %v463
    %784 = vmatprep.subr.mxu0 0.0
    %785 = vmatpush1.msra.mxu0 %v460
    %786 = vmatprep.subr.mxu0 0.0
    %787 = vmatpush1.msra.mxu0 %v457
    %788 = vmatprep.subr.mxu0 0.0
    %789 = vmatpush1.msra.mxu0 %v454
    %790 = vmatprep.subr.mxu0 0.0
    %791 = vmatpush1.msra.mxu0 %v451
    %792 = vmatprep.subr.mxu0 0.0
    %793 = vmatpush1.msra.mxu0 %v448
    %794 = vmatprep.subr.mxu0 0.0
    %795 = vmatpush1.msra.mxu0 %v445
    %796 = vmatprep.subr.mxu0 0.0
    %797 = vmatpush1.msra.mxu0 %v442
    %798 = vmatprep.subr.mxu0 0.0
    %799 = vmatpush1.msra.mxu0 %v439
    %800 = vmatprep.subr.mxu0 0.0
    %801 = vmatpush1.msra.mxu0 %v436
    %802 = vmatprep.subr.mxu0 0.0
    %803 = vmatpush1.msra.mxu0 %v433
    %804 = vmatprep.subr.mxu0 0.0
    %805 = vmatpush1.msra.mxu0 %v430
    %806 = vmatprep.subr.mxu0 0.0
    %807 = vmatpush1.msra.mxu0 %v427
    %808 = vmatprep.subr.mxu0 0.0
    %809 = vmatpush2.msra.mxu0 %v520
    %810 = vmatprep.subr.mxu0 0.0
    %811 = vmatpush2.msra.mxu0 %v517
    %812 = vmatprep.subr.mxu0 0.0
    %813 = vmatpush2.msra.mxu0 %v514
    %814 = vmatprep.subr.mxu0 0.0
    %815 = vmatpush2.msra.mxu0 %v511
    %816 = vmatprep.subr.mxu0 0.0
    %817 = vmatpush2.msra.mxu0 %v508
    %818 = vmatprep.subr.mxu0 0.0
    %819 = vmatpush2.msra.mxu0 %v505
    %820 = vmatprep.subr.mxu0 0.0
    %821 = vmatpush2.msra.mxu0 %v502
    %822 = vmatprep.subr.mxu0 0.0
    %823 = vmatpush2.msra.mxu0 %v499
    %824 = vmatprep.subr.mxu0 0.0
    %825 = vmatpush2.msra.mxu0 %v496
    %826 = vmatprep.subr.mxu0 0.0
    %827 = vmatpush2.msra.mxu0 %v493
    %828 = vmatprep.subr.mxu0 0.0
    %829 = vmatpush2.msra.mxu0 %v490
    %830 = vmatprep.subr.mxu0 0.0
    %831 = vmatpush2.msra.mxu0 %v487
    %832 = vmatprep.subr.mxu0 0.0
    %833 = vmatpush2.msra.mxu0 %v484
    %834 = vmatprep.subr.mxu0 0.0
    %835 = vmatpush2.msra.mxu0 %v481
    %836 = vmatprep.subr.mxu0 0.0
    %837 = vmatpush2.msra.mxu0 %v478
    %838 = vmatprep.subr.mxu0 0.0
    %839 = vmatpush2.msra.mxu0 %v475
    %840 = vmatprep.mubr.f32.mxu0 %v422
    %841 = vmatmul.mubr.f32.gmra.mxu0 %v421
    %v842 = vpop.f32.mrf.mxu0
    %v843 = vadd.f32 %v630, %v842
    %v844 = vpop.f32.mrf.mxu0
    %845 = vdwg.mxu0
    %846 = vmatprep.subr.mxu0 0.0
    %847 = vmatpush1.msra.mxu0 %v568
    %848 = vmatprep.subr.mxu0 0.0
    %849 = vmatpush1.msra.mxu0 %v565
    %850 = vmatprep.subr.mxu0 0.0
    %851 = vmatpush1.msra.mxu0 %v562
    %852 = vmatprep.subr.mxu0 0.0
    %853 = vmatpush1.msra.mxu0 %v559
    %854 = vmatprep.subr.mxu0 0.0
    %855 = vmatpush1.msra.mxu0 %v556
    %856 = vmatprep.subr.mxu0 0.0
    %857 = vmatpush1.msra.mxu0 %v553
    %858 = vmatprep.subr.mxu0 0.0
    %859 = vmatpush1.msra.mxu0 %v550
    %860 = vmatprep.subr.mxu0 0.0
    %861 = vmatpush1.msra.mxu0 %v547
    %862 = vmatprep.subr.mxu0 0.0
    %863 = vmatpush1.msra.mxu0 %v544
    %864 = vmatprep.subr.mxu0 0.0
    %865 = vmatpush1.msra.mxu0 %v541
    %866 = vmatprep.subr.mxu0 0.0
    %867 = vmatpush1.msra.mxu0 %v538
    %868 = vmatprep.subr.mxu0 0.0
    %869 = vmatpush1.msra.mxu0 %v535
    %870 = vmatprep.subr.mxu0 0.0
    %871 = vmatpush1.msra.mxu0 %v532
    %872 = vmatprep.subr.mxu0 0.0
    %873 = vmatpush1.msra.mxu0 %v529
    %874 = vmatprep.subr.mxu0 0.0
    %875 = vmatpush1.msra.mxu0 %v526
    %876 = vmatprep.subr.mxu0 0.0
    %877 = vmatpush1.msra.mxu0 %v523
    %878 = vmatprep.subr.mxu0 0.0
    %879 = vmatpush2.msra.mxu0 %v616
    %880 = vmatprep.subr.mxu0 0.0
    %881 = vmatpush2.msra.mxu0 %v613
    %882 = vmatprep.subr.mxu0 0.0
    %883 = vmatpush2.msra.mxu0 %v610
    %884 = vmatprep.subr.mxu0 0.0
    %885 = vmatpush2.msra.mxu0 %v607
    %886 = vmatprep.subr.mxu0 0.0
    %887 = vmatpush2.msra.mxu0 %v604
    %888 = vmatprep.subr.mxu0 0.0
    %889 = vmatpush2.msra.mxu0 %v601
    %890 = vmatprep.subr.mxu0 0.0
    %891 = vmatpush2.msra.mxu0 %v598
    %892 = vmatprep.subr.mxu0 0.0
    %893 = vmatpush2.msra.mxu0 %v595
    %894 = vmatprep.subr.mxu0 0.0
    %895 = vmatpush2.msra.mxu0 %v592
    %896 = vmatprep.subr.mxu0 0.0
    %897 = vmatpush2.msra.mxu0 %v589
    %898 = vmatprep.subr.mxu0 0.0
    %899 = vmatpush2.msra.mxu0 %v586
    %900 = vmatprep.subr.mxu0 0.0
    %901 = vmatpush2.msra.mxu0 %v583
    %902 = vmatprep.subr.mxu0 0.0
    %903 = vmatpush2.msra.mxu0 %v580
    %904 = vmatprep.subr.mxu0 0.0
    %905 = vmatpush2.msra.mxu0 %v577
    %906 = vmatprep.subr.mxu0 0.0
    %907 = vmatpush2.msra.mxu0 %v574
    %908 = vmatprep.subr.mxu0 0.0
    %909 = vmatpush2.msra.mxu0 %v571
    %910 = vmatprep.mubr.f32.mxu0 %v424
    %911 = vmatmul.mubr.f32.gmra.mxu0 %v423
    %v912 = vpop.f32.mrf.mxu0
    %v913 = vadd.f32 %v843, %v912
    %v914 = vpop.f32.mrf.mxu0
    %915 = vdwg.mxu0
    %v916 = vmax.f32 %v772, 0.0
    %v917 = vmax.f32 %v774, 0.0
    %v918 = vmax.f32 %v913, 0.0
    %v919 = vld [vmem:[%s7] sm:$0x7]
    %v921 = vlaneseq
    %v922 = vshrl.u32 %v921, 7
    %v923 = vsub.s32 0, %v922
    %v924 = vrot.slane %v919, %v923
    %v925 = vlaneseq
    %v926 = vshrl.u32 %v925, 7
    %v927 = vsub.s32 1, %v926
    %v928 = vrot.slane %v919, %v927
    %v929 = vlaneseq
    %v930 = vshrl.u32 %v929, 7
    %v931 = vsub.s32 2, %v930
    %v932 = vrot.slane %v919, %v931
    %v936 = vmul.f32 %v916, %v924
    %v937 = vmul.f32 %v917, %v928
    %v938 = vmul.f32 %v918, %v932
    %v939 = vadd.f32 %v936, %v937
    %v940 = vadd.f32 %v939, %v938
    %941 = vadd.xlane.f32.xlu0 %v940
    %v942 = vpop.xlane.xlu0 %941
    %v943 = vld [vmem:[#allocation2] sm:$0x1]
    %v945 = vlaneseq
    %v946 = vshrl.u32 %v945, 7
    %v947 = vsub.s32 0, %v946
    %v948 = vrot.slane %v943, %v947
    %v950 = vadd.f32 %v942, %v948
    %vm951 = vcmask 7168
    %952 = vst.msk [vmem:[%s9] sm:$0xff] %vm951, %v950
    // Predicated region
    $region58: #{tpu_custom_call.1} parent=1 // pred_check
      _
    $region59: #{tpu_custom_call.1} parent=1 // pred_check_branch
      %954 = sbr.rel (0) target = $region61
    $region60: #{tpu_custom_call.1} parent=1 // pred_region
      _
    $region61: #{tpu_custom_call.1} parent=1 // pred_fallthru
      _
    // Predicated region
    $region62: #{tpu_custom_call.1} parent=1 // pred_check
      _
    $region63: #{tpu_custom_call.1} parent=1 // pred_check_branch
      %956 = sbr.rel (0) target = $region65
    $region64: #{tpu_custom_call.1} parent=1 // pred_region
      _
    $region65: #{tpu_custom_call.1} parent=1 // pred_fallthru
      _
    %957 = vsyncpa [#allocation4], 1
    %958 = vsyncpa [#allocation6], 1
    %959 = vsyncpa [#allocation9], 1

</llo_original>
